<compile_context>
chip_gen: v5e
topology: v5e:2x2
jax: 0.10.0
libtpu: 0.0.40
codegen_flags: <defaults>
</compile_context>

<pallas_src>
import functools

import jax
import jax.numpy as jnp
from jax import lax
from jax.experimental import pallas as pl
from jax.experimental.pallas import tpu as pltpu


@functools.cache
def _roll_like_numpy() -> bool:
    """Probe pltpu.roll's rotation convention once (tiny pallas_call).

    Returns True if pltpu.roll(x, s, axis)[..., j] == x[..., (j - s) % n]
    (i.e. np.roll semantics).  The main kernel only needs the direction;
    wrap-around values are masked out either way."""
    def k(x_ref, o_ref):
        o_ref[...] = pltpu.roll(x_ref[...], 1, 1)

    x = jnp.broadcast_to(lax.iota(jnp.float32, 128)[None, :], (8, 128))
    y = pl.pallas_call(k, out_shape=jax.ShapeDtypeStruct((8, 128), jnp.float32))(x)
    return bool(y[0, 1] == 0.0)


def _make_erpab_kernel(H, W, C, dils, roll_like_numpy):
    HW = H * W

    def kernel(x_ref, wf_ref, b_ref, wpa1_ref, wpa2_ref, o_ref):
        x = x_ref[0]                                      # (C, HW)  lane-dense

        pos = lax.broadcasted_iota(jnp.int32, (1, HW), 1)
        row = pos // W
        col = pos - row * W

        def shift(a, dy, dx):
            # b[:, p] = a[:, p + dy*W + dx] if (row+dy, col+dx) in-bounds else 0.
            off = dy * W + dx
            if off == 0:
                return a
            s = (-off) % HW if roll_like_numpy else off % HW
            b = pltpu.roll(a, s, 1)                       # XLU lane rotation
            valid = ((row + dy >= 0) & (row + dy < H) &
                     (col + dx >= 0) & (col + dx < W))
            return jnp.where(valid, b, 0.0)

        def im2col(a, d):
            # (9 * C, HW): tap-major, channel-minor rows (matches weight layout).
            return jnp.concatenate(
                [shift(a, (ky - 1) * d, (kx - 1) * d)
                 for ky in range(3) for kx in range(3)], axis=0)

        # --- three dilated 3x3 convs fused (offline) with the 1x1 outconv ----
        acc = jnp.zeros((C, HW), jnp.float32)
        for g, d in enumerate(dils):
            acc = acc + jnp.dot(wf_ref[g], im2col(x, d),
                                preferred_element_type=jnp.float32)
        t = jnp.maximum(acc + b_ref[...], 0.0)            # (C, HW), bias+ReLU

        # --- pixel attention (mid_channels // reduction == 1) ----------------
        # 3x3 C->1 conv as one matmul; weight rows are replicated so every row
        # of p1 already holds the single attention channel (no slice needed).
        p1 = jnp.maximum(
            jnp.dot(wpa1_ref[...], im2col(t, 1),
                    preferred_element_type=jnp.float32), 0.0)     # (C, HW)

        # 3x3 1->C conv: nine (C,1)*(C,HW) outer-product accumulations on VPU.
        p2 = jnp.zeros((C, HW), jnp.float32)
        tap = 0
        for ky in range(3):
            for kx in range(3):
                p2 = p2 + wpa2_ref[tap] * shift(p1, ky - 1, kx - 1)
                tap += 1
        res = jax.nn.sigmoid(p2)

        # --- fused gating + residual + ReLU ----------------------------------
        o_ref[0] = jnp.maximum(t * res + x, 0.0)

    return kernel


def erpab_pallas(x_nchw, params, dils=(1, 2, 5)):
    N, C, H, W = x_nchw.shape
    HW = H * W
    x_flat = x_nchw.reshape(N, C, HW)          # free reshape, stays channel-first

    kernel = _make_erpab_kernel(H, W, C, dils, _roll_like_numpy())

    def full_spec(shape):
        nd = len(shape)
        return pl.BlockSpec(shape, lambda n, nd=nd: (0,) * nd)

    grid_spec = pltpu.PrefetchScalarGridSpec(
        num_scalar_prefetch=0,
        grid=(N,),
        in_specs=[
            pl.BlockSpec((1, C, HW), lambda n: (n, 0, 0)),
            full_spec(params["wfused"].shape),
            full_spec(params["bout_k"].shape),
            full_spec(params["wpa1_k"].shape),
            full_spec(params["wpa2_k"].shape),
        ],
        out_specs=pl.BlockSpec((1, C, HW), lambda n: (n, 0, 0)),
    )

    out = pl.pallas_call(
        kernel,
        out_shape=jax.ShapeDtypeStruct((N, C, HW), jnp.float32),
        grid_spec=grid_spec,
        compiler_params=pltpu.CompilerParams(
            dimension_semantics=("parallel",)),   # v7x: batch split across 2 TCs
    )(x_flat, params["wfused"], params["bout_k"],
      params["wpa1_k"], params["wpa2_k"])
    return out.reshape(N, C, H, W)


def init_params(key, C, Cmid):
    """Deterministic synthetic parameters.

    Produces HWIO weights (for the XLA reference) plus the fused /
    matmul-ready layouts consumed by the Pallas kernel."""
    assert C == Cmid, "ERPAB requires in_channels == mid_channels (t * res)."
    ks = jax.random.split(key, 7)
    s = 0.1
    w1 = s * jax.random.normal(ks[0], (3, 3, C, Cmid), jnp.float32)
    w2 = s * jax.random.normal(ks[1], (3, 3, C, Cmid), jnp.float32)
    w3 = s * jax.random.normal(ks[2], (3, 3, C, Cmid), jnp.float32)
    wout = s * jax.random.normal(ks[3], (1, 1, 3 * Cmid, C), jnp.float32)
    bout = s * jax.random.normal(ks[4], (C,), jnp.float32)
    wpa1 = s * jax.random.normal(ks[5], (3, 3, Cmid, 1), jnp.float32)
    wpa2 = s * jax.random.normal(ks[6], (3, 3, 1, Cmid), jnp.float32)

    # Fold the (bias-free) dilated convs into the 1x1 outconv offline:
    #   wfused[g, o, tap*C + ci] = sum_m w_g[ky,kx,ci,m] * wout[g*Cmid+m, o]
    wout_g = wout.reshape(3, Cmid, C)                       # [g, m, o]

    def fuse(w_hwio, g):
        return jnp.einsum("hwim,mo->ohwi", w_hwio, wout_g[g]).reshape(C, 9 * C)

    wfused = jnp.stack([fuse(w1, 0), fuse(w2, 1), fuse(w3, 2)], axis=0)

    # PA conv1 (C -> 1): tap-major flattened row, replicated across C sublanes
    # so the in-kernel matmul output is already broadcast along sublanes.
    wpa1_row = wpa1.transpose(3, 0, 1, 2).reshape(1, 9 * Cmid)
    wpa1_k = jnp.tile(wpa1_row, (Cmid, 1))                  # (C, 9*C)

    # PA conv2 (1 -> C): per-tap (C, 1) columns.
    wpa2_k = wpa2.reshape(9, Cmid)[:, :, None]              # (9, C, 1)

    return dict(
        # HWIO weights consumed by the pure-JAX reference
        w1_hwio=w1, w2_hwio=w2, w3_hwio=w3, wout_hwio=wout,
        wpa1_hwio=wpa1, wpa2_hwio=wpa2, bout=bout,
        # fused / matmul-ready layouts consumed by the Pallas kernel
        wfused=wfused,
        bout_k=bout.reshape(C, 1),
        wpa1_k=wpa1_k,
        wpa2_k=wpa2_k,
    )


def erpab_reference(x, p, dils=(1, 2, 5)):
    """Pure-JAX (XLA conv) reference of the PyTorch forward, in NCHW."""
    dn = ("NCHW", "HWIO", "NCHW")

    def conv(a, w, d, pad):
        return lax.conv_general_dilated(
            a, w, window_strides=(1, 1),
            padding=[(pad, pad), (pad, pad)],
            rhs_dilation=(d, d),
            dimension_numbers=dn)

    y0 = conv(x, p["w1_hwio"], dils[0], dils[0])
    y1 = conv(x, p["w2_hwio"], dils[1], dils[1])
    y2 = conv(x, p["w3_hwio"], dils[2], dils[2])
    cat = jnp.concatenate([y0, y1, y2], axis=1)
    t = conv(cat, p["wout_hwio"], 1, 0) + p["bout"][None, :, None, None]
    t = jax.nn.relu(t)
    p1 = jax.nn.relu(conv(t, p["wpa1_hwio"], 1, 1))
    res = jax.nn.sigmoid(conv(p1, p["wpa2_hwio"], 1, 1))
    return jax.nn.relu(t * res + x)


if __name__ == "__main__":
    # Small shapes consistent with the module: in_channels == mid_channels,
    # mid_channels // reduction == 1 (as in the PyTorch defaults 32/32/32).
    N, H, W = 2, 16, 16
    C = Cmid = 8
    dils = (1, 2, 5)

    key = jax.random.PRNGKey(0)
    kx, kp = jax.random.split(key)
    x = jax.random.normal(kx, (N, C, H, W), jnp.float32)   # NCHW, like PyTorch
    params = init_params(kp, C, Cmid)

    out = erpab_pallas(x, params, dils)
    out = jax.block_until_ready(out)

    ref = erpab_reference(x, params, dils)
    assert out.shape == ref.shape, (out.shape, ref.shape)
    if not jnp.allclose(out, ref, atol=1e-2, rtol=1e-2):
        raise AssertionError(
            f"mismatch: max abs err = {float(jnp.max(jnp.abs(out - ref)))}")

    print("KERNEL_OK")
</pallas_src>

<mosaic_0001>
module attributes {stable_mosaic.version = 11 : i64} {
  func.func @k(%arg0: memref<8x128xf32, #tpu.memory_space<vmem>>, %arg1: memref<8x128xf32, #tpu.memory_space<vmem>>) attributes {dimension_semantics = [], scalar_prefetch = 0 : i64, scratch_operands = 0 : i64, tpu.core_type = #tpu.core_type<tc>} {
    %c0 = arith.constant 0 : index
    %c0_0 = arith.constant 0 : index
    %0 = vector.load %arg0[%c0, %c0_0] : memref<8x128xf32, #tpu.memory_space<vmem>>, vector<8x128xf32>
    %c1_i32 = arith.constant 1 : i32
    %1 = tpu.dynamic_rotate %0 by %c1_i32 dim 1 : vector<8x128xf32>, i32 -> vector<8x128xf32>
    %c0_1 = arith.constant 0 : index
    %c0_2 = arith.constant 0 : index
    %2 = vector.load %arg1[%c0_1, %c0_2] : memref<8x128xf32, #tpu.memory_space<vmem>>, vector<8x128xf32>
    tpu.vector_store %arg1[%c0_1, %c0_2], %1 {strides = array<i32>} : memref<8x128xf32, #tpu.memory_space<vmem>>, vector<8x128xf32>,
    return
  }
}

</mosaic_0001>

<llo_original>
// kernel: tpu_custom_call.1
$region0: #{tpu_custom_call.1}
  #allocation0 [shape = 'u32[]', space=smem, size = 0x4, offset = 0x4, fixed_abs, tag = 'smem constant byte address 0x4 - core index']
  #allocation1 [shape = 'u32[72,128]{1,0:T(1,128)}', space=vmem, size = 0x9000, scoped, tag = 'internal scratch']
  %s0 = inlined_call_operand.hbm [shape: f32[8,128], index: 0, kind: input, shape index: {}]
  %s1 = inlined_call_operand.hbm [shape: f32[8,128], index: 1, kind: output, shape index: {}]
  %s2 = sld [smem:[#allocation0]]
  $region18: #{tpu_custom_call.1} parent=0
    _
  %s4 = ssub.s32 1, %s2
  %s5 = scalar_select 0, %s4, %s2
  $region1: #{tpu_custom_call.1} parent=0
    #allocation2 [shape = 'u8[4096]{0}', space=vmem, size = 0x1000, scoped, tag = 'input window, operand 0, single buffered']
    #allocation3 [shape = 's32[1]{0}', space=sflag, size = 0x4, scoped, tag = 'scoped memory for tpu_custom_call.1']
    #allocation4 [shape = 's32[1]{0}', space=sflag, size = 0x4, scoped, tag = 'scoped memory for tpu_custom_call.1']
    #allocation5 [shape = 'u8[4096]{0}', space=vmem, size = 0x1000, scoped, tag = 'output window, operand 0, single buffered']
    %6 = vsyncpa [#allocation3], 0
    %7 = vsyncpa [#allocation4], 0
    // Predicated region
    $region2: #{tpu_custom_call.1} parent=1 // pred_check
      _
    $region3: #{tpu_custom_call.1} parent=1 // pred_check_branch
      %9 = sbr.rel (0) target = $region5
    $region4: #{tpu_custom_call.1} parent=1 // pred_region
      %11 = vsyncadd [#allocation3], 0
      %s13 = sshll.u32 %s0, 4
      %s14 = int_to_ptr.hbm [resolvable:$true] %s13
      %s15 = sshll.u32 [#allocation2], 4
      %s16 = int_to_ptr.vmem [resolvable:$true] %s15
      %18 = dma.hbm_to_vmem [thread:$0]  %s14, 128, %s16, [#allocation3]
    $region5: #{tpu_custom_call.1} parent=1 // pred_fallthru
      _
    // Predicated region
    $region6: #{tpu_custom_call.1} parent=1 // pred_check
      _
    $region7: #{tpu_custom_call.1} parent=1 // pred_check_branch
      %20 = sbr.rel (0) target = $region9
    $region8: #{tpu_custom_call.1} parent=1 // pred_region
      %22 = dma.done [#allocation3], 128
    $region9: #{tpu_custom_call.1} parent=1 // pred_fallthru
      _
    %v23 = vld [vmem:[#allocation2] sm:$0xff]
    %24 = vrot.lane.b32.xlu0 %v23, 1
    %v25 = vpop.permute.xlu0 %24
    %26 = vst [vmem:[#allocation5] sm:$0xff] %v25
    // Predicated region
    $region10: #{tpu_custom_call.1} parent=1 // pred_check
      _
    $region11: #{tpu_custom_call.1} parent=1 // pred_check_branch
      %28 = sbr.rel (0) target = $region13
    $region12: #{tpu_custom_call.1} parent=1 // pred_region
      %30 = vsyncadd [#allocation4], 0
      %s32 = sshll.u32 [#allocation5], 4
      %s33 = int_to_ptr.vmem [resolvable:$true] %s32
      %s34 = sshll.u32 %s1, 4
      %s35 = int_to_ptr.hbm [resolvable:$true] %s34
      %37 = dma.vmem_to_hbm [thread:$0]  %s33, 128, %s35, [#allocation4]
    $region13: #{tpu_custom_call.1} parent=1 // pred_fallthru
      _
    // Predicated region
    $region14: #{tpu_custom_call.1} parent=1 // pred_check
      _
    $region15: #{tpu_custom_call.1} parent=1 // pred_check_branch
      %39 = sbr.rel (0) target = $region17
    $region16: #{tpu_custom_call.1} parent=1 // pred_region
      %41 = dma.done [#allocation4], 128
    $region17: #{tpu_custom_call.1} parent=1 // pred_fallthru
      _
    %42 = vsyncpa [#allocation3], 1
    %43 = vsyncpa [#allocation4], 1

</llo_original>
